<compile_context>
chip_gen: v5e
topology: v5e:2x2
jax: 0.10.0
libtpu: 0.0.40
codegen_flags: <defaults>
</compile_context>

<pallas_src>
import functools
import math

import jax
import jax.numpy as jnp
from jax import lax
from jax.experimental import pallas as pl
from jax.experimental.pallas import tpu as pltpu


# ---------------------------------------------------------------------------
# Chip detection (tile choice / bf16-exp default only; safe fallbacks)
# ---------------------------------------------------------------------------
@functools.lru_cache(maxsize=1)
def _chip_kind():
    try:
        return jax.devices()[0].device_kind.lower()
    except Exception:  # pragma: no cover
        return ""


def _tensorcores_per_chip():
    return 2 if "v7" in _chip_kind() else 1


def _default_use_bf16_exp():
    k = _chip_kind()
    return ("v6" in k) or ("v7" in k)


# ---------------------------------------------------------------------------
# Parameter construction (mirrors get_embeddings / __init__)
# ---------------------------------------------------------------------------
def get_embeddings(n_embeddings):
    angles = jnp.linspace(0.0, 2.0 * math.pi, n_embeddings)
    x = jnp.cos(angles)
    y = jnp.sin(angles)
    embeddings = jnp.stack([x, y], axis=1) * 4.0  # (n_embeddings, 2)
    return embeddings.astype(jnp.float32)


# ---------------------------------------------------------------------------
# Pallas kernel: per-column logsumexp_n( alpha * ||z_n - e_k||^2 )
# ---------------------------------------------------------------------------
def _lse_kernel(scale_ref, z_ref, et_ref, lse_ref, *,
                n_real, chunk_n, use_mxu, use_bf16_exp):
    # scale_ref: SMEM (1,)          f32   sqrt(-alpha)
    # z_ref:     VMEM (N_pad, D)    f32   whole z (constant across the grid)
    # et_ref:    VMEM (D, TILE_K)   f32   one K-tile of e^T (K on lanes)
    # lse_ref:   VMEM (1, TILE_K)   f32   per-column logsumexp over N
    scale = scale_ref[0]
    d_dim = et_ref.shape[0]
    tk = et_ref.shape[1]
    n_pad = z_ref.shape[0]

    # Fold alpha into the operands: s = alpha * ||z - e||^2 = -||s*z - s*e||^2
    ets = et_ref[...] * scale                                        # (D, TK)
    ee = jnp.sum(ets * ets, axis=0, keepdims=True) if use_mxu else None

    def chunk_scores(start, size):
        """s[(rows), k] = alpha * ||z_row - e_k||^2 for rows [start, start+size)."""
        zc = z_ref[pl.ds(start, size), :] * scale                    # (size, D)
        if use_mxu:
            # MXU: -(||z||^2 + ||e||^2 - 2 z.e^T)
            zz = jnp.sum(zc * zc, axis=1, keepdims=True)             # (size, 1)
            cross = jnp.dot(zc, ets, preferred_element_type=jnp.float32)
            return 2.0 * cross - zz - ee
        # VPU: unrolled broadcast-subtract over the tiny static z_dim.
        acc = jnp.zeros((size, tk), dtype=jnp.float32)
        for d in range(d_dim):
            diff = zc[:, d:d + 1] - ets[d:d + 1, :]                  # (size, TK)
            acc = acc + diff * diff
        return -acc

    def mask_rows(s, start, size):
        if n_pad == n_real:
            return s
        row = start + lax.broadcasted_iota(jnp.int32, (size, tk), 0)
        return jnp.where(row < n_real, s, -jnp.inf)

    def exp_fn(x):
        if use_bf16_exp:
            # v6e/v7x EUP has native bf16 exp (~2x throughput); casts co-issue.
            return jnp.exp(x.astype(jnp.bfloat16)).astype(jnp.float32)
        return jnp.exp(x)

    if n_pad <= chunk_n:
        # Direct path: whole (N, TILE_K) score block fits in vregs.
        s = mask_rows(chunk_scores(0, n_pad), 0, n_pad)
        m = jnp.max(s, axis=0, keepdims=True)                        # (1, TK)
        p = exp_fn(s - m)
        lse_ref[...] = m + jnp.log(jnp.sum(p, axis=0, keepdims=True))
    else:
        # Online logsumexp over N chunks (flash-attention style running m / l)
        # keeps live temporaries at (chunk_n, TILE_K) instead of (N, TILE_K).
        n_chunks = n_pad // chunk_n

        def body(i, carry):
            m, l = carry
            start = pl.multiple_of(i * chunk_n, chunk_n)
            s = mask_rows(chunk_scores(start, chunk_n), start, chunk_n)
            m_new = jnp.maximum(m, jnp.max(s, axis=0, keepdims=True))
            a = exp_fn(m - m_new)
            p = exp_fn(s - m_new)
            l = a * l + jnp.sum(p, axis=0, keepdims=True)
            return m_new, l

        m0 = jnp.full((1, tk), -jnp.inf, jnp.float32)
        l0 = jnp.zeros((1, tk), jnp.float32)
        m, l = lax.fori_loop(0, n_chunks, body, (m0, l0),
                             unroll=bool(n_chunks <= 4))
        lse_ref[...] = m + jnp.log(l)


def _per_column_lse(alpha, z, e_t, *, tile_k=1024, chunk_n=16,
                    use_bf16_exp=None):
    """Returns lse[k] = logsumexp_n(alpha * ||z_n - e_k||^2), shape (K,).

    alpha must be a negative scalar (shape (1,)); e_t has shape (D, K).
    """
    if use_bf16_exp is None:
        use_bf16_exp = _default_use_bf16_exp()

    N, D = z.shape
    K = e_t.shape[1]
    scale = jnp.sqrt(-alpha).astype(jnp.float32)                     # (1,)

    # Lane-dense K tile: multiple of 128, no bigger than the rounded-up K.
    k_rounded = pl.cdiv(K, 128) * 128
    tile_k = max(128, min(tile_k, k_rounded))
    # v7x has 2 TensorCores: keep >= 2 grid steps so the "parallel" K axis
    # actually shards across both cores.  v5e/v6e (1 TC) maximize tile_k.
    if _tensorcores_per_chip() >= 2 and k_rounded >= 256:
        tile_k = min(tile_k, max(128, (k_rounded // 2 // 128) * 128))
    n_tiles = pl.cdiv(K, tile_k)
    k_pad = n_tiles * tile_k
    if k_pad != K:
        # Padded columns produce finite lse values; sliced away below.
        e_t = jnp.pad(e_t, ((0, 0), (0, k_pad - K)))

    # N padding (chunked online-lse path only); padded rows masked in-kernel.
    n_real = N
    if N > chunk_n:
        n_pad = pl.cdiv(N, chunk_n) * chunk_n
        if n_pad != N:
            z = jnp.pad(z, ((0, n_pad - N), (0, 0)))
    else:
        n_pad = N

    # MXU only when it is actually utilized; otherwise exact VPU loop.
    use_mxu = (D >= 8) and (n_real >= 64)

    kernel = functools.partial(
        _lse_kernel, n_real=n_real, chunk_n=chunk_n,
        use_mxu=use_mxu, use_bf16_exp=use_bf16_exp)

    lse = pl.pallas_call(
        kernel,
        out_shape=jax.ShapeDtypeStruct((1, k_pad), jnp.float32),
        grid=(n_tiles,),
        in_specs=[
            pl.BlockSpec(memory_space=pltpu.MemorySpace.SMEM),       # scale (1,)
            pl.BlockSpec((n_pad, D), lambda k: (0, 0)),              # z, resident
            pl.BlockSpec((D, tile_k), lambda k: (0, k)),             # e^T tile
        ],
        out_specs=pl.BlockSpec((1, tile_k), lambda k: (0, k)),
        compiler_params=pltpu.CompilerParams(
            dimension_semantics=("parallel",),
        ),
    )(scale, z, e_t)
    return lse[0, :K]


# ---------------------------------------------------------------------------
# LatentLayer forward (JAX glue + Pallas hot path)
# ---------------------------------------------------------------------------
class LatentLayer:
    def __init__(self, n_embeddings, z_dim, init_log_sigma, **kwargs):
        self.embeddings = get_embeddings(n_embeddings)      # (n_emb, 2), frozen
        self.log_sigma = jnp.ones((1,), jnp.float32) * init_log_sigma

    def forward(self, data, *, M, temperature, eps_key, use_bf16_exp=None,
                **kwargs):
        z = data['z']                                        # (N, z_dim) f32
        z_dim = z.shape[1]
        N = z.shape[0]
        T = temperature
        n_embeddings = self.embeddings.shape[0]
        m_per = M // n_embeddings                            # assumes M % n_emb == 0

        # Sample bank built directly in (z_dim, K) lane-dense layout:
        # column k = emb_idx * m_per + eps_idx  (same ordering as the reference).
        mean_t = ((1.0 - T) * self.embeddings).T             # (z_dim, n_emb)
        eps = jax.random.normal(eps_key, (m_per, z_dim), jnp.float32)
        e_t = mean_t[:, :, None] + (T * eps.T)[:, None, :]   # (z_dim, n_emb, m_per)
        e_t = e_t.reshape(z_dim, n_embeddings * m_per)       # (z_dim, K)

        sigma = jnp.exp(self.log_sigma)                      # (1,)
        alpha = (-1.0 / (2.0 * sigma ** 2)).astype(jnp.float32)

        # Hot path in Pallas: distances + logsumexp over N, per column k.
        lse = _per_column_lse(alpha, z.astype(jnp.float32), e_t,
                              use_bf16_exp=use_bf16_exp)     # (K,)
        neg_mean_lse = -jnp.mean(lse)

        # np.log(np.e) == 1.0
        loss = neg_mean_lse + 0.5 * z_dim * (2.0 * self.log_sigma - 1.0) + math.log(N)
        data['lse_loss'] = loss                              # shape (1,), like torch
        return data


# ---------------------------------------------------------------------------
# Pure-JAX references for correctness checking
# ---------------------------------------------------------------------------
def _reference_loss(z, e, log_sigma):
    sigma = jnp.exp(log_sigma)
    dist = jnp.sum((z[:, None, :] - e[None, :, :]) ** 2, axis=2)     # (N, K)
    alpha = -1.0 / (2.0 * sigma ** 2)
    lse = jax.scipy.special.logsumexp(alpha * dist, axis=0)          # (K,)
    loss = -jnp.mean(lse)
    loss = loss + 0.5 * z.shape[1] * (2.0 * log_sigma - 1.0) + math.log(z.shape[0])
    return loss


def _reference_lse_cols(alpha, z, e):
    dist = jnp.sum((z[:, None, :] - e[None, :, :]) ** 2, axis=2)     # (N, K)
    return jax.scipy.special.logsumexp(alpha * dist, axis=0)         # (K,)


if __name__ == "__main__":
    # Spec-like config: N=8 samples, z_dim=2, n_embeddings=8, M=1024 -> K=1024.
    n_embeddings = 8
    z_dim = 2
    init_log_sigma = -0.5
    N = 8
    M = 1024
    temperature = 0.5

    key = jax.random.PRNGKey(0)
    k_z, k_eps, k_a, k_b, k_c = jax.random.split(key, 5)
    z = jax.random.normal(k_z, (N, z_dim), jnp.float32)

    layer = LatentLayer(n_embeddings, z_dim, init_log_sigma)

    # Reference sample bank (identical construction / ordering).
    mean = (1.0 - temperature) * layer.embeddings
    eps = jax.random.normal(k_eps, (M // n_embeddings, z_dim), jnp.float32)
    e = (mean[:, None, :] + eps[None, :, :] * temperature).reshape(-1, z_dim)
    ref = jax.block_until_ready(_reference_loss(z, e, layer.log_sigma))

    # 1) f32-exp path, tight tolerance.
    out = layer.forward({'z': z}, M=M, temperature=temperature, eps_key=k_eps,
                        use_bf16_exp=False)
    loss = jax.block_until_ready(out['lse_loss'])
    assert loss.shape == (1,)
    assert jnp.allclose(loss, ref, rtol=1e-5, atol=1e-4), (loss, ref)

    # 2) default path (bf16 exp auto-enabled on v6e/v7x) -> loose tolerance.
    out_auto = layer.forward({'z': z}, M=M, temperature=temperature, eps_key=k_eps)
    loss_auto = jax.block_until_ready(out_auto['lse_loss'])
    assert jnp.allclose(loss_auto, ref, rtol=2e-2, atol=5e-2), (loss_auto, ref)

    # 3) ragged K (column-padding path, K not a multiple of 128).
    alpha = jnp.array([-0.7], jnp.float32)
    e_rag = jax.random.normal(k_a, (200, z_dim), jnp.float32)
    lse_rag = jax.block_until_ready(
        _per_column_lse(alpha, z, e_rag.T, use_bf16_exp=False))
    ref_rag = jax.block_until_ready(_reference_lse_cols(alpha[0], z, e_rag))
    assert jnp.allclose(lse_rag, ref_rag, rtol=1e-5, atol=1e-4)

    # 4) larger N -> chunked online-logsumexp path with row masking (N=100).
    N_big = 100
    z_bigN = jax.random.normal(k_b, (N_big, z_dim), jnp.float32)
    e_bigN = jax.random.normal(k_a, (300, z_dim), jnp.float32)
    lse_bigN = jax.block_until_ready(
        _per_column_lse(alpha, z_bigN, e_bigN.T, use_bf16_exp=False))
    ref_bigN = jax.block_until_ready(_reference_lse_cols(alpha[0], z_bigN, e_bigN))
    assert jnp.allclose(lse_bigN, ref_bigN, rtol=1e-5, atol=1e-4)

    # 5) large N and D -> chunked MXU norm-decomposition branch.
    D_big = 16
    z_mxu = jax.random.normal(k_c, (128, D_big), jnp.float32)
    e_mxu = jax.random.normal(k_a, (256, D_big), jnp.float32)
    lse_mxu = jax.block_until_ready(
        _per_column_lse(alpha, z_mxu, e_mxu.T, use_bf16_exp=False))
    ref_mxu = jax.block_until_ready(_reference_lse_cols(alpha[0], z_mxu, e_mxu))
    assert jnp.allclose(lse_mxu, ref_mxu, rtol=1e-4, atol=1e-3)

    print("KERNEL_OK")
</pallas_src>

<mosaic_0001>
module attributes {stable_mosaic.version = 11 : i64} {
  func.func @_lse_kernel(%arg0: i32, %arg1: memref<1xf32, #tpu.memory_space<smem>>, %arg2: memref<8x2xf32, #tpu.memory_space<vmem>>, %arg3: memref<2x1024xf32, #tpu.memory_space<vmem>>, %arg4: memref<1x1024xf32, #tpu.memory_space<vmem>>) attributes {dimension_semantics = [#tpu.dimension_semantics<parallel>], iteration_bounds = array<i64: 1>, scalar_prefetch = 0 : i64, scratch_operands = 0 : i64, tpu.core_type = #tpu.core_type<tc>, window_params = [{transform_indices = @transform_0, window_bounds = array<i64: 1>}, {pipeline_mode = #tpu.pipeline_mode<synchronous>, transform_indices = @transform_1, window_bounds = array<i64: 8, 2>}, {transform_indices = @transform_2, window_bounds = array<i64: 2, 1024>}, {transform_indices = @transform_3, window_bounds = array<i64: 1, 1024>}]} {
    %c0 = arith.constant 0 : index
    %0 = memref.load %arg1[%c0] : memref<1xf32, #tpu.memory_space<smem>>
    %c0_0 = arith.constant 0 : index
    %c0_1 = arith.constant 0 : index
    %1 = vector.load %arg3[%c0_0, %c0_1] : memref<2x1024xf32, #tpu.memory_space<vmem>>, vector<2x1024xf32>
    %2 = vector.broadcast %0 : f32 to vector<2x1024xf32>
    %3 = arith.mulf %1, %2 : vector<2x1024xf32>
    %c0_2 = arith.constant 0 : index
    %c0_3 = arith.constant 0 : index
    %4 = vector.load %arg2[%c0_2, %c0_3] : memref<8x2xf32, #tpu.memory_space<vmem>>, vector<8x2xf32>
    %5 = vector.broadcast %0 : f32 to vector<8x2xf32>
    %6 = arith.mulf %4, %5 : vector<8x2xf32>
    %cst = arith.constant 0.000000e+00 : f32
    %7 = vector.broadcast %cst : f32 to vector<8x1024xf32>
    %8 = vector.extract_strided_slice %6 {offsets = [0, 0], sizes = [8, 1], strides = [1, 1]} : vector<8x2xf32> to vector<8x1xf32>
    %9 = vector.extract_strided_slice %3 {offsets = [0, 0], sizes = [1, 1024], strides = [1, 1]} : vector<2x1024xf32> to vector<1x1024xf32>
    %10 = vector.broadcast %8 : vector<8x1xf32> to vector<8x1024xf32>
    %11 = vector.broadcast %9 : vector<1x1024xf32> to vector<8x1024xf32>
    %12 = arith.subf %10, %11 : vector<8x1024xf32>
    %13 = arith.mulf %12, %12 : vector<8x1024xf32>
    %14 = arith.addf %7, %13 : vector<8x1024xf32>
    %15 = vector.extract_strided_slice %6 {offsets = [0, 1], sizes = [8, 1], strides = [1, 1]} : vector<8x2xf32> to vector<8x1xf32>
    %16 = vector.extract_strided_slice %3 {offsets = [1, 0], sizes = [1, 1024], strides = [1, 1]} : vector<2x1024xf32> to vector<1x1024xf32>
    %17 = vector.broadcast %15 : vector<8x1xf32> to vector<8x1024xf32>
    %18 = vector.broadcast %16 : vector<1x1024xf32> to vector<8x1024xf32>
    %19 = arith.subf %17, %18 : vector<8x1024xf32>
    %20 = arith.mulf %19, %19 : vector<8x1024xf32>
    %21 = arith.addf %14, %20 : vector<8x1024xf32>
    %cst_4 = arith.constant 0.000000e+00 : f32
    %22 = vector.broadcast %cst_4 : f32 to vector<8x1024xf32>
    %23 = arith.subf %22, %21 : vector<8x1024xf32>
    %cst_5 = arith.constant dense<0xFF800000> : vector<1024xf32>
    %24 = vector.multi_reduction <maximumf>, %23, %cst_5 [0] : vector<8x1024xf32> to vector<1024xf32>
    %25 = vector.shape_cast %24 : vector<1024xf32> to vector<1x1024xf32>
    %26 = vector.broadcast %25 : vector<1x1024xf32> to vector<8x1024xf32>
    %27 = arith.subf %23, %26 : vector<8x1024xf32>
    %28 = math.exp %27 : vector<8x1024xf32>
    %cst_6 = arith.constant dense<0.000000e+00> : vector<1024xf32>
    %29 = vector.multi_reduction <add>, %28, %cst_6 [0] : vector<8x1024xf32> to vector<1024xf32>
    %30 = vector.shape_cast %29 : vector<1024xf32> to vector<1x1024xf32>
    %31 = math.log %30 : vector<1x1024xf32>
    %32 = arith.addf %25, %31 : vector<1x1024xf32>
    %c0_7 = arith.constant 0 : index
    %c0_8 = arith.constant 0 : index
    %33 = vector.load %arg4[%c0_7, %c0_8] : memref<1x1024xf32, #tpu.memory_space<vmem>>, vector<1x1024xf32>
    tpu.vector_store %arg4[%c0_7, %c0_8], %32 {strides = array<i32>} : memref<1x1024xf32, #tpu.memory_space<vmem>>, vector<1x1024xf32>,
    return
  }
  func.func @transform_0(%arg0: i32) -> i32 {
    %c0_i32 = arith.constant 0 : i32
    %c0_i32_0 = arith.constant 0 : i32
    return %c0_i32 : i32
  }
  func.func @transform_1(%arg0: i32) -> (i32, i32) {
    %c0_i32 = arith.constant 0 : i32
    %c0_i32_0 = arith.constant 0 : i32
    %c0_i32_1 = arith.constant 0 : i32
    return %c0_i32, %c0_i32_0 : i32, i32
  }
  func.func @transform_2(%arg0: i32) -> (i32, i32) {
    %c0_i32 = arith.constant 0 : i32
    %c0_i32_0 = arith.constant 0 : i32
    return %c0_i32, %arg0 : i32, i32
  }
  func.func @transform_3(%arg0: i32) -> (i32, i32) {
    %c0_i32 = arith.constant 0 : i32
    %c0_i32_0 = arith.constant 0 : i32
    return %c0_i32, %arg0 : i32, i32
  }
}

</mosaic_0001>

<llo_original>
// kernel: tpu_custom_call.1
$region0: #{tpu_custom_call.1}
  #allocation0 [shape = 'u32[]', space=smem, size = 0x4, offset = 0x4, fixed_abs, tag = 'smem constant byte address 0x4 - core index']
  #allocation1 [shape = 'u32[72,128]{1,0:T(1,128)}', space=vmem, size = 0x9000, scoped, tag = 'internal scratch']
  #allocation2 [shape = 'f32[1]{0:T(128)S(6)}', space=smem, size = 0x200, scoped, tag = 'scoped memory for tpu_custom_call.1']
  %s0 = inlined_call_operand.<no memory space> [shape: f32[1], index: 0, kind: input, shape index: {}]
  %s1 = inlined_call_operand.vmem [shape: f32[8,2], index: 1, kind: input, shape index: {}]
  %s2 = inlined_call_operand.hbm [shape: f32[2,1024], index: 2, kind: input, shape index: {}]
  %s3 = inlined_call_operand.hbm [shape: f32[1,1024], index: 3, kind: output, shape index: {}]
  %s4 = sld [smem:[#allocation0]]
  $region26: #{tpu_custom_call.1} parent=0
    _
  %s6 = ssub.s32 1, %s4
  %s7 = scalar_select 0, %s6, %s4
  %8 = sst [smem:[#allocation2]] %s0
  $region1: #{tpu_custom_call.1} parent=0
    #allocation3 [shape = 'u8[8192]{0}', space=vmem, size = 0x2000, scoped, tag = 'input window, operand 2, single buffered']
    #allocation4 [shape = 's32[1]{0}', space=sflag, size = 0x4, scoped, tag = 'scoped memory for tpu_custom_call.1']
    #allocation5 [shape = 's32[1]{0}', space=sflag, size = 0x4, scoped, tag = 'scoped memory for tpu_custom_call.1']
    #allocation6 [shape = 'u8[4096]{0}', space=vmem, size = 0x1000, scoped, tag = 'output window, operand 0, single buffered']
    %9 = vsyncpa [#allocation4], 0
    %10 = vsyncpa [#allocation5], 0
    // Predicated region
    $region2: #{tpu_custom_call.1} parent=1 // pred_check
      _
    $region3: #{tpu_custom_call.1} parent=1 // pred_check_branch
      %12 = sbr.rel (0) target = $region5
    $region4: #{tpu_custom_call.1} parent=1 // pred_region
      _
    $region5: #{tpu_custom_call.1} parent=1 // pred_fallthru
      _
    // Predicated region
    $region6: #{tpu_custom_call.1} parent=1 // pred_check
      _
    $region7: #{tpu_custom_call.1} parent=1 // pred_check_branch
      %14 = sbr.rel (0) target = $region9
    $region8: #{tpu_custom_call.1} parent=1 // pred_region
      _
    $region9: #{tpu_custom_call.1} parent=1 // pred_fallthru
      _
    // Predicated region
    $region10: #{tpu_custom_call.1} parent=1 // pred_check
      _
    $region11: #{tpu_custom_call.1} parent=1 // pred_check_branch
      %16 = sbr.rel (0) target = $region13
    $region12: #{tpu_custom_call.1} parent=1 // pred_region
      %18 = vsyncadd [#allocation4], 0
      %s20 = sshll.u32 %s2, 4
      %s21 = int_to_ptr.hbm [resolvable:$true] %s20
      %s22 = sshll.u32 [#allocation3], 4
      %s23 = int_to_ptr.vmem [resolvable:$true] %s22
      %25 = dma.hbm_to_vmem [thread:$0]  %s21, 256, %s23, [#allocation4]
    $region13: #{tpu_custom_call.1} parent=1 // pred_fallthru
      _
    // Predicated region
    $region14: #{tpu_custom_call.1} parent=1 // pred_check
      _
    $region15: #{tpu_custom_call.1} parent=1 // pred_check_branch
      %27 = sbr.rel (0) target = $region17
    $region16: #{tpu_custom_call.1} parent=1 // pred_region
      %29 = dma.done [#allocation4], 256
    $region17: #{tpu_custom_call.1} parent=1 // pred_fallthru
      _
    %s30 = sld [smem:[#allocation2]]
    %v31 = vld [vmem:[#allocation3] sm:$0xff]
    %v32 = vld [vmem:[#allocation3 + $0x8] sm:$0xff]
    %v33 = vstv %s30
    %v34 = vmul.f32 %v31, %v33
    %v35 = vmul.f32 %v32, %v33
    %v36 = vld [vmem:[%s1] sm:$0xff]
    %v37 = vmul.f32 %v36, %v33
    %39 = vset.pattern.permute.xlu0 0
    %40 = vperm.xlu0 %39, %v37
    %v41 = vpop.permute.xlu0 %40
    %v45 = vperm.slane %v34, 0
    %v46 = vperm.slane %v34, 2
    %v47 = vperm.slane %v34, 4
    %v48 = vperm.slane %v34, 6
    %v49 = vperm.slane %v35, 0
    %v50 = vperm.slane %v35, 2
    %v51 = vperm.slane %v35, 4
    %v52 = vperm.slane %v35, 6
    %v61 = vperm.slane %v45, 0
    %v62 = vperm.slane %v46, 0
    %v63 = vperm.slane %v47, 0
    %v64 = vperm.slane %v48, 0
    %v65 = vperm.slane %v49, 0
    %v66 = vperm.slane %v50, 0
    %v67 = vperm.slane %v51, 0
    %v68 = vperm.slane %v52, 0
    %v69 = vsub.f32 %v41, %v61
    %v70 = vsub.f32 %v41, %v62
    %v71 = vsub.f32 %v41, %v63
    %v72 = vsub.f32 %v41, %v64
    %v73 = vsub.f32 %v41, %v65
    %v74 = vsub.f32 %v41, %v66
    %v75 = vsub.f32 %v41, %v67
    %v76 = vsub.f32 %v41, %v68
    %v77 = vmul.f32 %v69, %v69
    %v78 = vmul.f32 %v70, %v70
    %v79 = vmul.f32 %v71, %v71
    %v80 = vmul.f32 %v72, %v72
    %v81 = vmul.f32 %v73, %v73
    %v82 = vmul.f32 %v74, %v74
    %v83 = vmul.f32 %v75, %v75
    %v84 = vmul.f32 %v76, %v76
    %v85 = vadd.f32 %v77, 0.0
    %v86 = vadd.f32 %v78, 0.0
    %v87 = vadd.f32 %v79, 0.0
    %v88 = vadd.f32 %v80, 0.0
    %v89 = vadd.f32 %v81, 0.0
    %v90 = vadd.f32 %v82, 0.0
    %v91 = vadd.f32 %v83, 0.0
    %v92 = vadd.f32 %v84, 0.0
    %93 = vset.pattern.permute.xlu0 1
    %94 = vperm.xlu0 %93, %v37
    %v95 = vpop.permute.xlu0 %94
    %v97 = vperm.slane %v34, 1
    %v98 = vperm.slane %v34, 3
    %v99 = vperm.slane %v34, 5
    %v100 = vperm.slane %v34, 7
    %v101 = vperm.slane %v35, 1
    %v102 = vperm.slane %v35, 3
    %v103 = vperm.slane %v35, 5
    %v104 = vperm.slane %v35, 7
    %v113 = vperm.slane %v97, 1
    %v114 = vperm.slane %v98, 1
    %v115 = vperm.slane %v99, 1
    %v116 = vperm.slane %v100, 1
    %v117 = vperm.slane %v101, 1
    %v118 = vperm.slane %v102, 1
    %v119 = vperm.slane %v103, 1
    %v120 = vperm.slane %v104, 1
    %v121 = vsub.f32 %v95, %v113
    %v122 = vsub.f32 %v95, %v114
    %v123 = vsub.f32 %v95, %v115
    %v124 = vsub.f32 %v95, %v116
    %v125 = vsub.f32 %v95, %v117
    %v126 = vsub.f32 %v95, %v118
    %v127 = vsub.f32 %v95, %v119
    %v128 = vsub.f32 %v95, %v120
    %v129 = vmul.f32 %v121, %v121
    %v130 = vmul.f32 %v122, %v122
    %v131 = vmul.f32 %v123, %v123
    %v132 = vmul.f32 %v124, %v124
    %v133 = vmul.f32 %v125, %v125
    %v134 = vmul.f32 %v126, %v126
    %v135 = vmul.f32 %v127, %v127
    %v136 = vmul.f32 %v128, %v128
    %v137 = vadd.f32 %v85, %v129
    %v138 = vadd.f32 %v86, %v130
    %v139 = vadd.f32 %v87, %v131
    %v140 = vadd.f32 %v88, %v132
    %v141 = vadd.f32 %v89, %v133
    %v142 = vadd.f32 %v90, %v134
    %v143 = vadd.f32 %v91, %v135
    %v144 = vadd.f32 %v92, %v136
    %v145 = vsub.f32 0.0, %v137
    %v146 = vsub.f32 0.0, %v138
    %v147 = vsub.f32 0.0, %v139
    %v148 = vsub.f32 0.0, %v140
    %v149 = vsub.f32 0.0, %v141
    %v150 = vsub.f32 0.0, %v142
    %v151 = vsub.f32 0.0, %v143
    %v152 = vsub.f32 0.0, %v144
    %v153 = vrot.slane %v145, 4
    %v154 = vmax.f32 %v145, %v153
    %v155 = vrot.slane %v154, 2
    %v156 = vmax.f32 %v154, %v155
    %v157 = vrot.slane %v156, 1
    %v158 = vmax.f32 %v156, %v157
    %v159 = vrot.slane %v146, 4
    %v160 = vmax.f32 %v146, %v159
    %v161 = vrot.slane %v160, 2
    %v162 = vmax.f32 %v160, %v161
    %v163 = vrot.slane %v162, 1
    %v164 = vmax.f32 %v162, %v163
    %v165 = vrot.slane %v147, 4
    %v166 = vmax.f32 %v147, %v165
    %v167 = vrot.slane %v166, 2
    %v168 = vmax.f32 %v166, %v167
    %v169 = vrot.slane %v168, 1
    %v170 = vmax.f32 %v168, %v169
    %v171 = vrot.slane %v148, 4
    %v172 = vmax.f32 %v148, %v171
    %v173 = vrot.slane %v172, 2
    %v174 = vmax.f32 %v172, %v173
    %v175 = vrot.slane %v174, 1
    %v176 = vmax.f32 %v174, %v175
    %v177 = vrot.slane %v149, 4
    %v178 = vmax.f32 %v149, %v177
    %v179 = vrot.slane %v178, 2
    %v180 = vmax.f32 %v178, %v179
    %v181 = vrot.slane %v180, 1
    %v182 = vmax.f32 %v180, %v181
    %v183 = vrot.slane %v150, 4
    %v184 = vmax.f32 %v150, %v183
    %v185 = vrot.slane %v184, 2
    %v186 = vmax.f32 %v184, %v185
    %v187 = vrot.slane %v186, 1
    %v188 = vmax.f32 %v186, %v187
    %v189 = vrot.slane %v151, 4
    %v190 = vmax.f32 %v151, %v189
    %v191 = vrot.slane %v190, 2
    %v192 = vmax.f32 %v190, %v191
    %v193 = vrot.slane %v192, 1
    %v194 = vmax.f32 %v192, %v193
    %v195 = vrot.slane %v152, 4
    %v196 = vmax.f32 %v152, %v195
    %v197 = vrot.slane %v196, 2
    %v198 = vmax.f32 %v196, %v197
    %v199 = vrot.slane %v198, 1
    %v200 = vmax.f32 %v198, %v199
    %v201 = vsub.f32 %v145, %v158
    %v202 = vsub.f32 %v146, %v164
    %v203 = vsub.f32 %v147, %v170
    %v204 = vsub.f32 %v148, %v176
    %v205 = vsub.f32 %v149, %v182
    %v206 = vsub.f32 %v150, %v188
    %v207 = vsub.f32 %v151, %v194
    %v208 = vsub.f32 %v152, %v200
    %v209 = vmul.f32 %v201, 1.442695
    %v210 = vpow.pop %v209
    %v211 = vmul.f32 %v202, 1.442695
    %v212 = vpow.pop %v211
    %v213 = vmul.f32 %v203, 1.442695
    %v214 = vpow.pop %v213
    %v215 = vmul.f32 %v204, 1.442695
    %v216 = vpow.pop %v215
    %v217 = vmul.f32 %v205, 1.442695
    %v218 = vpow.pop %v217
    %v219 = vmul.f32 %v206, 1.442695
    %v220 = vpow.pop %v219
    %v221 = vmul.f32 %v207, 1.442695
    %v222 = vpow.pop %v221
    %v223 = vmul.f32 %v208, 1.442695
    %v224 = vpow.pop %v223
    %v225 = vrot.slane %v210, 4
    %v226 = vadd.f32 %v210, %v225
    %v227 = vrot.slane %v226, 2
    %v228 = vadd.f32 %v226, %v227
    %v229 = vrot.slane %v228, 1
    %v230 = vadd.f32 %v228, %v229
    %v231 = vrot.slane %v212, 4
    %v232 = vadd.f32 %v212, %v231
    %v233 = vrot.slane %v232, 2
    %v234 = vadd.f32 %v232, %v233
    %v235 = vrot.slane %v234, 1
    %v236 = vadd.f32 %v234, %v235
    %v237 = vrot.slane %v214, 4
    %v238 = vadd.f32 %v214, %v237
    %v239 = vrot.slane %v238, 2
    %v240 = vadd.f32 %v238, %v239
    %v241 = vrot.slane %v240, 1
    %v242 = vadd.f32 %v240, %v241
    %v243 = vrot.slane %v216, 4
    %v244 = vadd.f32 %v216, %v243
    %v245 = vrot.slane %v244, 2
    %v246 = vadd.f32 %v244, %v245
    %v247 = vrot.slane %v246, 1
    %v248 = vadd.f32 %v246, %v247
    %v249 = vrot.slane %v218, 4
    %v250 = vadd.f32 %v218, %v249
    %v251 = vrot.slane %v250, 2
    %v252 = vadd.f32 %v250, %v251
    %v253 = vrot.slane %v252, 1
    %v254 = vadd.f32 %v252, %v253
    %v255 = vrot.slane %v220, 4
    %v256 = vadd.f32 %v220, %v255
    %v257 = vrot.slane %v256, 2
    %v258 = vadd.f32 %v256, %v257
    %v259 = vrot.slane %v258, 1
    %v260 = vadd.f32 %v258, %v259
    %v261 = vrot.slane %v222, 4
    %v262 = vadd.f32 %v222, %v261
    %v263 = vrot.slane %v262, 2
    %v264 = vadd.f32 %v262, %v263
    %v265 = vrot.slane %v264, 1
    %v266 = vadd.f32 %v264, %v265
    %v267 = vrot.slane %v224, 4
    %v268 = vadd.f32 %v224, %v267
    %v269 = vrot.slane %v268, 2
    %v270 = vadd.f32 %v268, %v269
    %v271 = vrot.slane %v270, 1
    %v272 = vadd.f32 %v270, %v271
    %v273 = vlog2.pop %v230
    %v274 = vmul.f32 %v273, 0.6931472
    %v275 = vlog2.pop %v236
    %v276 = vmul.f32 %v275, 0.6931472
    %v277 = vlog2.pop %v242
    %v278 = vmul.f32 %v277, 0.6931472
    %v279 = vlog2.pop %v248
    %v280 = vmul.f32 %v279, 0.6931472
    %v281 = vlog2.pop %v254
    %v282 = vmul.f32 %v281, 0.6931472
    %v283 = vlog2.pop %v260
    %v284 = vmul.f32 %v283, 0.6931472
    %v285 = vlog2.pop %v266
    %v286 = vmul.f32 %v285, 0.6931472
    %v287 = vlog2.pop %v272
    %v288 = vmul.f32 %v287, 0.6931472
    %v289 = vadd.f32 %v158, %v274
    %v290 = vadd.f32 %v164, %v276
    %v291 = vadd.f32 %v170, %v278
    %v292 = vadd.f32 %v176, %v280
    %v293 = vadd.f32 %v182, %v282
    %v294 = vadd.f32 %v188, %v284
    %v295 = vadd.f32 %v194, %v286
    %v296 = vadd.f32 %v200, %v288
    %v305 = vrot.slane %v290, 7
    %v306 = vrot.slane %v291, 6
    %v307 = vrot.slane %v292, 5
    %v308 = vrot.slane %v293, 4
    %v309 = vrot.slane %v294, 3
    %v310 = vrot.slane %v295, 2
    %v311 = vrot.slane %v296, 1
    %vm312 = vcmask 1040384
    %v313 = vsel %vm312, %v289, %v305
    %vm314 = vcmask 1042434
    %v315 = vsel %vm314, %v306, %v307
    %vm316 = vcmask 1041408
    %v317 = vsel %vm316, %v313, %v315
    %vm318 = vcmask 1044484
    %v319 = vsel %vm318, %v308, %v309
    %vm320 = vcmask 1046534
    %v321 = vsel %vm320, %v310, %v311
    %vm322 = vcmask 1045508
    %v323 = vsel %vm322, %v319, %v321
    %vm324 = vcmask 1043456
    %v325 = vsel %vm324, %v317, %v323
    %327 = vst [vmem:[#allocation6] sm:$0xff] %v325
    // Predicated region
    $region18: #{tpu_custom_call.1} parent=1 // pred_check
      _
    $region19: #{tpu_custom_call.1} parent=1 // pred_check_branch
      %329 = sbr.rel (0) target = $region21
    $region20: #{tpu_custom_call.1} parent=1 // pred_region
      %331 = vsyncadd [#allocation5], 0
      %s333 = sshll.u32 [#allocation6], 4
      %s334 = int_to_ptr.vmem [resolvable:$true] %s333
      %s335 = sshll.u32 %s3, 4
      %s336 = int_to_ptr.hbm [resolvable:$true] %s335
      %338 = dma.vmem_to_hbm [thread:$0]  %s334, 128, %s336, [#allocation5]
    $region21: #{tpu_custom_call.1} parent=1 // pred_fallthru
      _
    // Predicated region
    $region22: #{tpu_custom_call.1} parent=1 // pred_check
      _
    $region23: #{tpu_custom_call.1} parent=1 // pred_check_branch
      %340 = sbr.rel (0) target = $region25
    $region24: #{tpu_custom_call.1} parent=1 // pred_region
      %342 = dma.done [#allocation5], 128
    $region25: #{tpu_custom_call.1} parent=1 // pred_fallthru
      _
    %343 = vsyncpa [#allocation4], 1
    %344 = vsyncpa [#allocation5], 1

</llo_original>
